<compile_context>
chip_gen: v7x
topology: tpu7x:2x2x1
jax: 0.10.0
libtpu: 0.0.40
codegen_flags: <defaults>
</compile_context>

<pallas_src>
import functools
import math

import jax
import jax.numpy as jnp
from jax import lax
from jax.experimental import pallas as pl
from jax.experimental.pallas import tpu as pltpu

THRESHOLD = 20.0

_MAX_BLOCK_BYTES = 4 * 1024 * 1024      # per-input, per pipeline buffer
_VMEM_LIMIT_BYTES = 40 * 1024 * 1024    # covers v5e's 16 MiB scoped default, < v7x 64 MiB
_ALPHA_CAP_ELEMS = 1 << 19              # cap on the resident broadcast-alpha tile
_MIN_PALLAS_ELEMS = 64 * 1024           # below this, fused XLA beats a kernel launch
_LANE_WIDTHS = (1024, 512, 256, 128)


def _fold_tile(x, acc_rows):
    """(R, C) f32 -> (acc_rows, 128) partial sums.

    Only static sublane-aligned row slices and 128-aligned lane slices are used,
    so every add is a plain cross-vreg VPU op (no XLU reduce, no relayout).
    """
    r_total, c_total = x.shape
    acc = x[0:acc_rows, :]
    for r in range(acc_rows, r_total, acc_rows):
        acc = acc + x[r:r + acc_rows, :]
    out = acc[:, 0:128]
    for c in range(128, c_total, 128):
        out = out + acc[:, c:c + 128]
    return out


def _mse_pair_kernel(yj_ref, al_ref, pdiff_ref, palpha_ref, *, gt, threshold,
                     rows, row_block, acc_rows, need_mask, nb):
    """Same-shape path: stream y_j and alpha, emit diff and alpha partials."""
    yj = yj_ref[...].astype(jnp.float32)
    al = al_ref[...].astype(jnp.float32)

    diff = (yj - jnp.float32(gt)) ** 2 * al
    # Safe base for the fractional power (negative diff from negative alpha).
    clipped = jnp.power(jnp.maximum(diff, 0.0), 0.1) * jnp.float32(threshold ** 0.9)
    diff = jnp.where(diff >= jnp.float32(threshold), clipped, diff)

    def emit(d, a):
        pdiff_ref[...] = _fold_tile(d, acc_rows)[None]
        palpha_ref[...] = _fold_tile(a, acc_rows)[None]

    if not need_mask:
        emit(diff, al)
    else:
        i = pl.program_id(0)

        @pl.when(i < nb - 1)
        def _unmasked():
            emit(diff, al)

        @pl.when(i == nb - 1)
        def _masked():
            # Zero the contribution of out-of-bounds rows of the ragged last
            # block (Pallas pads such blocks with unspecified values).
            row_ids = lax.broadcasted_iota(jnp.int32, diff.shape, 0) + i * row_block
            valid = row_ids < rows
            emit(jnp.where(valid, diff, 0.0), jnp.where(valid, al, 0.0))


def _mse_balpha_kernel(yj_ref, al_ref, pdiff_ref, *, gt, threshold,
                       b_total, b_block, acc_rows, need_mask, nb):
    """Broadcast-alpha path: y_j streamed as (b, ra, ca); small alpha resident."""
    yj = yj_ref[...].astype(jnp.float32)          # (b_block, ra, ca)
    al = al_ref[...].astype(jnp.float32)          # (ra, ca), constant across steps

    diff = (yj - jnp.float32(gt)) ** 2 * al[None]
    clipped = jnp.power(jnp.maximum(diff, 0.0), 0.1) * jnp.float32(threshold ** 0.9)
    diff = jnp.where(diff >= jnp.float32(threshold), clipped, diff)

    def emit(d):
        part = jnp.sum(d, axis=0)                 # leading-axis reduce -> VPU adds
        pdiff_ref[...] = _fold_tile(part, acc_rows)[None]

    if not need_mask:
        emit(diff)
    else:
        i = pl.program_id(0)

        @pl.when(i < nb - 1)
        def _unmasked():
            emit(diff)

        @pl.when(i == nb - 1)
        def _masked():
            b_ids = lax.broadcasted_iota(jnp.int32, diff.shape, 0) + i * b_block
            emit(jnp.where(b_ids < b_total, diff, 0.0))


def _pallas_pair(y_j, alpha, gt_last_dim, threshold, max_block_bytes):
    """Same-shape alpha: returns (sum(diff), sum(alpha)) partial-reduced on TPU."""
    n = math.prod(y_j.shape)
    lane_c = next(c for c in _LANE_WIDTHS if n % c == 0)
    rows = n // lane_c

    itemsize_y = jnp.dtype(y_j.dtype).itemsize
    itemsize_a = jnp.dtype(alpha.dtype).itemsize
    sub = max(8, 32 // min(itemsize_y, itemsize_a))   # dtype-aware sublane multiple
    budget_elems = max(lane_c * sub, max_block_bytes // itemsize_y)  # byte-sized blocks
    max_rows = max(sub, (budget_elems // lane_c) // sub * sub)

    row_block = rows if rows <= max_rows else max_rows
    nb = -(-rows // row_block)
    need_mask = (rows % row_block) != 0
    acc_rows = 8 if row_block % 8 == 0 else row_block

    yj2 = jnp.reshape(y_j, (rows, lane_c))    # metadata-only reshape
    al2 = jnp.reshape(alpha, (rows, lane_c))

    kernel = functools.partial(
        _mse_pair_kernel, gt=float(gt_last_dim), threshold=float(threshold),
        rows=rows, row_block=row_block, acc_rows=acc_rows,
        need_mask=need_mask, nb=nb)

    pdiff, palpha = pl.pallas_call(
        kernel,
        out_shape=(jax.ShapeDtypeStruct((nb, acc_rows, 128), jnp.float32),
                   jax.ShapeDtypeStruct((nb, acc_rows, 128), jnp.float32)),
        grid_spec=pltpu.PrefetchScalarGridSpec(
            num_scalar_prefetch=0,
            grid=(nb,),
            in_specs=[pl.BlockSpec((row_block, lane_c), lambda i: (i, 0)),
                      pl.BlockSpec((row_block, lane_c), lambda i: (i, 0))],
            out_specs=(pl.BlockSpec((1, acc_rows, 128), lambda i: (i, 0, 0)),
                       pl.BlockSpec((1, acc_rows, 128), lambda i: (i, 0, 0)))),
        compiler_params=pltpu.CompilerParams(
            dimension_semantics=("parallel",),
            vmem_limit_bytes=_VMEM_LIMIT_BYTES),
    )(yj2, al2)
    return jnp.sum(pdiff), jnp.sum(palpha)


def _leading_broadcast_period(a_shape, y_shape):
    """If alpha broadcasts against y_j purely along leading dims, return its flat
    period (alpha.size); otherwise None."""
    a = list(a_shape)
    while a and a[0] == 1:
        a = a[1:]
    if len(a) > len(y_shape):
        return None
    if tuple(a) != tuple(y_shape)[len(y_shape) - len(a):]:
        return None
    return int(math.prod(a)) if a else 1


def _broadcast_tile_factor(m, b_outer, cap_elems):
    """Smallest t with (m*t) % 128 == 0, t | b_outer and m*t <= cap, preferring
    m*t >= 1024 (>= 8 full sublanes)."""
    if m <= 0 or b_outer <= 0:
        return None
    t0 = 128 // math.gcd(m, 128)
    fallback = None
    k = 1
    while m * k * t0 <= cap_elems:
        t = k * t0
        if b_outer % t == 0:
            if m * t >= 1024:
                return t
            if fallback is None:
                fallback = t
        k += 1
    return fallback


def _pallas_balpha(y_j, alpha, m, t, gt_last_dim, threshold, max_block_bytes):
    """Broadcast alpha: returns sum(diff); alpha kept resident in VMEM."""
    n = math.prod(y_j.shape)
    m2 = m * t
    b_total = n // m2

    ca = None
    for c in _LANE_WIDTHS:                      # prefer >= 8 sublanes per period
        if m2 % c == 0 and m2 // c >= 8:
            ca = c
            break
    if ca is None:
        ca = next(c for c in _LANE_WIDTHS if m2 % c == 0)
    ra = m2 // ca

    al_flat = jnp.reshape(alpha, (-1,))
    if t > 1:
        al_flat = jnp.tile(al_flat, t)          # tiny (<= _ALPHA_CAP_ELEMS elements)
    al2 = jnp.reshape(al_flat, (ra, ca))
    yj3 = jnp.reshape(y_j, (b_total, ra, ca))   # metadata-only reshape

    itemsize = jnp.dtype(y_j.dtype).itemsize
    budget_elems = max(m2, max_block_bytes // itemsize)
    b_block = max(1, min(b_total, budget_elems // m2))
    nb = -(-b_total // b_block)
    need_mask = (b_total % b_block) != 0
    acc_rows = 8 if ra % 8 == 0 else ra

    kernel = functools.partial(
        _mse_balpha_kernel, gt=float(gt_last_dim), threshold=float(threshold),
        b_total=b_total, b_block=b_block, acc_rows=acc_rows,
        need_mask=need_mask, nb=nb)

    pdiff = pl.pallas_call(
        kernel,
        out_shape=jax.ShapeDtypeStruct((nb, acc_rows, 128), jnp.float32),
        grid_spec=pltpu.PrefetchScalarGridSpec(
            num_scalar_prefetch=0,
            grid=(nb,),
            in_specs=[pl.BlockSpec((b_block, ra, ca), lambda i: (i, 0, 0)),
                      pl.BlockSpec((ra, ca), lambda i: (0, 0))],   # resident alpha
            out_specs=pl.BlockSpec((1, acc_rows, 128), lambda i: (i, 0, 0))),
        compiler_params=pltpu.CompilerParams(
            dimension_semantics=("parallel",),
            vmem_limit_bytes=_VMEM_LIMIT_BYTES),
    )(yj3, al2)
    return jnp.sum(pdiff)


def _ref_loss(y_j, y_j_gt, alpha, threshold=THRESHOLD):
    """Plain-JAX mirror of the torch module (also the tiny/ragged fallback)."""
    dimension = y_j.shape[-1]
    gt = jnp.float32(y_j_gt.shape[-1])
    diff = (y_j.astype(jnp.float32) - gt) ** 2 * alpha.astype(jnp.float32)
    diff = jnp.where(diff >= threshold,
                     jnp.power(jnp.maximum(diff, 0.0), 0.1) * threshold ** 0.9,
                     diff)
    denom = dimension * jnp.maximum(jnp.float32(1.0),
                                    jnp.sum(alpha).astype(jnp.float32))
    return jnp.sum(diff) / denom


def mse_loss(y_j, y_j_gt, alpha, threshold=THRESHOLD,
             min_pallas_elems=_MIN_PALLAS_ELEMS,
             max_block_bytes=_MAX_BLOCK_BYTES):
    """Pallas implementation of MSEloss.forward(y_j, y_j_gt, alpha)."""
    dimension = int(y_j.shape[-1])        # static, from y_j
    gt_last_dim = int(y_j_gt.shape[-1])   # GT tensor only contributes this int
    n = int(math.prod(y_j.shape))

    same_shape = tuple(alpha.shape) == tuple(y_j.shape)

    # Tiny-input fast path: kernel-launch overhead dominates; fused XLA wins.
    if n < max(1, min_pallas_elems):
        return _ref_loss(y_j, y_j_gt, alpha, threshold)

    if same_shape:
        if n % 128 != 0:
            # TODO(synk): ragged lane tail (n % 128 != 0); padding/slicing would
            # add a full HBM copy and fused XLA is already at the HBM roofline.
            return _ref_loss(y_j, y_j_gt, alpha, threshold)
        sum_diff, sum_alpha = _pallas_pair(y_j, alpha, gt_last_dim, threshold,
                                           max_block_bytes)
    else:
        m = _leading_broadcast_period(alpha.shape, y_j.shape)
        t = None
        if m is not None and n % m == 0:
            t = _broadcast_tile_factor(m, n // m, _ALPHA_CAP_ELEMS)
        if t is None:
            # TODO(synk): broadcast pattern with no small periodic tile (e.g.
            # size-1 dims in the middle of alpha); fused XLA handles it without
            # materializing the broadcast.
            return _ref_loss(y_j, y_j_gt, alpha, threshold)
        sum_diff = _pallas_balpha(y_j, alpha, m, t, gt_last_dim, threshold,
                                  max_block_bytes)
        # torch.sum(alpha) is over the ORIGINAL (small) alpha tensor.
        sum_alpha = jnp.sum(alpha).astype(jnp.float32)

    denom = jnp.float32(dimension) * jnp.maximum(jnp.float32(1.0), sum_alpha)
    return sum_diff / denom


if __name__ == "__main__":
    key = jax.random.PRNGKey(0)
    k1, k2, k3, k4 = jax.random.split(key, 4)

    # Shapes consistent with the forward: (batch=2, seq=8, hidden=32).
    y_j = jax.random.normal(k1, (2, 8, 32), jnp.float32) * 3.0
    y_j_gt = jax.random.normal(k2, (2, 8, 32), jnp.float32)
    alpha = jax.random.uniform(k3, (2, 8, 32), jnp.float32) * 2.0

    # 1) same-shape alpha -> streaming pair kernel (min_pallas_elems=0 forces
    #    the Pallas path past the tiny-input fast path).
    loss = mse_loss(y_j, y_j_gt, alpha, min_pallas_elems=0)
    jax.block_until_ready(loss)
    ref = _ref_loss(y_j, y_j_gt, alpha)
    assert jnp.allclose(loss, ref, rtol=1e-5, atol=1e-5), (loss, ref)

    # 2) broadcast alpha (per-feature weights) -> resident small-alpha kernel,
    #    no materialized broadcast, no discarded alpha partial-sum output.
    alpha_vec = jax.random.uniform(k4, (32,), jnp.float32) * 2.0
    loss_b = mse_loss(y_j, y_j_gt, alpha_vec, min_pallas_elems=0)
    jax.block_until_ready(loss_b)
    ref_b = _ref_loss(y_j, y_j_gt, alpha_vec)
    assert jnp.allclose(loss_b, ref_b, rtol=1e-5, atol=1e-5), (loss_b, ref_b)

    # 3) multi-block + ragged-row-tail path (tiny max_block_bytes forces several
    #    grid steps and exercises the pl.when-gated mask on the last one).
    y_j3 = jax.random.normal(k1, (2, 21, 64), jnp.float32) * 4.0
    y_gt3 = jnp.zeros((2, 21, 64), jnp.float32)
    alpha3 = jax.random.uniform(k3, (2, 21, 64), jnp.float32) * 2.0
    loss3 = mse_loss(y_j3, y_gt3, alpha3, min_pallas_elems=0, max_block_bytes=4096)
    jax.block_until_ready(loss3)
    ref3 = _ref_loss(y_j3, y_gt3, alpha3)
    assert jnp.allclose(loss3, ref3, rtol=1e-5, atol=1e-5), (loss3, ref3)

    print("KERNEL_OK")
</pallas_src>

<mosaic_0001>
module attributes {stable_mosaic.version = 11 : i64} {
  func.func @_mse_pair_kernel(%arg0: i32, %arg1: memref<1x512xf32, #tpu.memory_space<vmem>>, %arg2: memref<1x512xf32, #tpu.memory_space<vmem>>, %arg3: memref<1x1x128xf32, #tpu.memory_space<vmem>>, %arg4: memref<1x1x128xf32, #tpu.memory_space<vmem>>) attributes {dimension_semantics = [#tpu.dimension_semantics<parallel>], iteration_bounds = array<i64: 1>, scalar_prefetch = 0 : i64, scratch_operands = 0 : i64, tpu.core_type = #tpu.core_type<tc>, window_params = [{transform_indices = @transform_0, window_bounds = array<i64: 1, 512>}, {transform_indices = @transform_1, window_bounds = array<i64: 1, 512>}, {transform_indices = @transform_2, window_bounds = array<i64: 1, 1, 128>}, {transform_indices = @transform_3, window_bounds = array<i64: 1, 1, 128>}]} {
    %c0 = arith.constant 0 : index
    %c0_0 = arith.constant 0 : index
    %0 = vector.load %arg1[%c0, %c0_0] : memref<1x512xf32, #tpu.memory_space<vmem>>, vector<1x512xf32>
    %c0_1 = arith.constant 0 : index
    %c0_2 = arith.constant 0 : index
    %1 = vector.load %arg2[%c0_1, %c0_2] : memref<1x512xf32, #tpu.memory_space<vmem>>, vector<1x512xf32>
    %cst = arith.constant 3.200000e+01 : f32
    %2 = vector.broadcast %cst : f32 to vector<1x512xf32>
    %3 = arith.subf %0, %2 : vector<1x512xf32>
    %4 = arith.mulf %3, %3 : vector<1x512xf32>
    %5 = arith.mulf %4, %1 : vector<1x512xf32>
    %cst_3 = arith.constant 0.000000e+00 : f32
    %6 = vector.broadcast %cst_3 : f32 to vector<1x512xf32>
    %7 = arith.maximumf %5, %6 : vector<1x512xf32>
    %cst_4 = arith.constant 1.000000e-01 : f32
    %8 = vector.broadcast %cst_4 : f32 to vector<1x512xf32>
    %9 = math.powf %7, %8 : vector<1x512xf32>
    %cst_5 = arith.constant 14.8226891 : f32
    %10 = vector.broadcast %cst_5 : f32 to vector<1x512xf32>
    %11 = arith.mulf %9, %10 : vector<1x512xf32>
    %cst_6 = arith.constant 2.000000e+01 : f32
    %12 = vector.broadcast %cst_6 : f32 to vector<1x512xf32>
    %13 = arith.cmpf oge, %5, %12 : vector<1x512xf32>
    %14 = arith.select %13, %11, %5 : vector<1x512xi1>, vector<1x512xf32>
    %15 = vector.extract_strided_slice %14 {offsets = [0, 0], sizes = [1, 128], strides = [1, 1]} : vector<1x512xf32> to vector<1x128xf32>
    %16 = vector.extract_strided_slice %14 {offsets = [0, 128], sizes = [1, 128], strides = [1, 1]} : vector<1x512xf32> to vector<1x128xf32>
    %17 = arith.addf %15, %16 : vector<1x128xf32>
    %18 = vector.extract_strided_slice %14 {offsets = [0, 256], sizes = [1, 128], strides = [1, 1]} : vector<1x512xf32> to vector<1x128xf32>
    %19 = arith.addf %17, %18 : vector<1x128xf32>
    %20 = vector.extract_strided_slice %14 {offsets = [0, 384], sizes = [1, 128], strides = [1, 1]} : vector<1x512xf32> to vector<1x128xf32>
    %21 = arith.addf %19, %20 : vector<1x128xf32>
    %22 = vector.shape_cast %21 : vector<1x128xf32> to vector<1x1x128xf32>
    %c0_7 = arith.constant 0 : index
    %c0_8 = arith.constant 0 : index
    %c0_9 = arith.constant 0 : index
    %23 = vector.load %arg3[%c0_7, %c0_8, %c0_9] : memref<1x1x128xf32, #tpu.memory_space<vmem>>, vector<1x1x128xf32>
    tpu.vector_store %arg3[%c0_7, %c0_8, %c0_9], %22 {strides = array<i32>} : memref<1x1x128xf32, #tpu.memory_space<vmem>>, vector<1x1x128xf32>,
    %24 = vector.extract_strided_slice %1 {offsets = [0, 0], sizes = [1, 128], strides = [1, 1]} : vector<1x512xf32> to vector<1x128xf32>
    %25 = vector.extract_strided_slice %1 {offsets = [0, 128], sizes = [1, 128], strides = [1, 1]} : vector<1x512xf32> to vector<1x128xf32>
    %26 = arith.addf %24, %25 : vector<1x128xf32>
    %27 = vector.extract_strided_slice %1 {offsets = [0, 256], sizes = [1, 128], strides = [1, 1]} : vector<1x512xf32> to vector<1x128xf32>
    %28 = arith.addf %26, %27 : vector<1x128xf32>
    %29 = vector.extract_strided_slice %1 {offsets = [0, 384], sizes = [1, 128], strides = [1, 1]} : vector<1x512xf32> to vector<1x128xf32>
    %30 = arith.addf %28, %29 : vector<1x128xf32>
    %31 = vector.shape_cast %30 : vector<1x128xf32> to vector<1x1x128xf32>
    %c0_10 = arith.constant 0 : index
    %c0_11 = arith.constant 0 : index
    %c0_12 = arith.constant 0 : index
    %32 = vector.load %arg4[%c0_10, %c0_11, %c0_12] : memref<1x1x128xf32, #tpu.memory_space<vmem>>, vector<1x1x128xf32>
    tpu.vector_store %arg4[%c0_10, %c0_11, %c0_12], %31 {strides = array<i32>} : memref<1x1x128xf32, #tpu.memory_space<vmem>>, vector<1x1x128xf32>,
    return
  }
  func.func @transform_0(%arg0: i32) -> (i32, i32) {
    %c0_i32 = arith.constant 0 : i32
    %c0_i32_0 = arith.constant 0 : i32
    return %arg0, %c0_i32 : i32, i32
  }
  func.func @transform_1(%arg0: i32) -> (i32, i32) {
    %c0_i32 = arith.constant 0 : i32
    %c0_i32_0 = arith.constant 0 : i32
    return %arg0, %c0_i32 : i32, i32
  }
  func.func @transform_2(%arg0: i32) -> (i32, i32, i32) {
    %c0_i32 = arith.constant 0 : i32
    %c0_i32_0 = arith.constant 0 : i32
    %c0_i32_1 = arith.constant 0 : i32
    return %arg0, %c0_i32, %c0_i32_0 : i32, i32, i32
  }
  func.func @transform_3(%arg0: i32) -> (i32, i32, i32) {
    %c0_i32 = arith.constant 0 : i32
    %c0_i32_0 = arith.constant 0 : i32
    %c0_i32_1 = arith.constant 0 : i32
    return %arg0, %c0_i32, %c0_i32_0 : i32, i32, i32
  }
}

</mosaic_0001>

<llo_original>
// kernel: tpu_custom_call.1
$region0: #{tpu_custom_call.1}
  #allocation0 [shape = 'u32[]', space=smem, size = 0x4, offset = 0x4, fixed_abs, tag = 'smem constant byte address 0x4 - core index']
  #allocation1 [shape = 'u32[144,128]{1,0:T(1,128)}', space=vmem, size = 0x12000, scoped, tag = 'internal scratch']
  %s0 = inlined_call_operand.hbm [shape: f32[1,512], index: 0, kind: input, shape index: {}]
  %s1 = inlined_call_operand.hbm [shape: f32[1,512], index: 1, kind: input, shape index: {}]
  %s2 = inlined_call_operand.hbm [shape: f32[1,1,128], index: 2, kind: output, shape index: {0}]
  %s3 = inlined_call_operand.hbm [shape: f32[1,1,128], index: 3, kind: output, shape index: {1}]
  %4 = xla_tuple %s2, %s3
  %s5 = sld [smem:[#allocation0]]
  $region34: #{tpu_custom_call.1} parent=0
    _
  %s7 = ssub.s32 1, %s5
  %s8 = scalar_select 0, %s7, %s5
  $region1: #{tpu_custom_call.1} parent=0
    #allocation2 [shape = 'u8[2048]{0}', space=vmem, size = 0x800, scoped, tag = 'input window, operand 0, single buffered']
    #allocation3 [shape = 's32[1]{0}', space=sflag, size = 0x4, scoped, tag = 'scoped memory for tpu_custom_call.1']
    #allocation4 [shape = 's32[1]{0}', space=sflag, size = 0x4, scoped, tag = 'scoped memory for tpu_custom_call.1']
    #allocation5 [shape = 'u8[2048]{0}', space=vmem, size = 0x800, scoped, tag = 'input window, operand 1, single buffered']
    #allocation6 [shape = 's32[1]{0}', space=sflag, size = 0x4, scoped, tag = 'scoped memory for tpu_custom_call.1']
    #allocation7 [shape = 'u8[512]{0}', space=vmem, size = 0x400, scoped, tag = 'output window, operand 0, single buffered']
    #allocation8 [shape = 'u8[512]{0}', space=vmem, size = 0x400, scoped, tag = 'output window, operand 1, single buffered']
    #allocation9 [shape = 's32[1]{0}', space=sflag, size = 0x4, scoped, tag = 'scoped memory for tpu_custom_call.1']
    %9 = vsyncpa [#allocation3], 0
    %10 = vsyncpa [#allocation6], 0
    %11 = vsyncpa [#allocation4], 0
    %12 = vsyncpa [#allocation9], 0
    // Predicated region
    $region2: #{tpu_custom_call.1} parent=1 // pred_check
      _
    $region3: #{tpu_custom_call.1} parent=1 // pred_check_branch
      %14 = sbr.rel (0) target = $region5
    $region4: #{tpu_custom_call.1} parent=1 // pred_region
      %s16 = ssub.s32 64, 64
      %17 = vsyncadd [#allocation3], %s16
      %s19 = sshll.u32 [#allocation2], 4
      %s20 = int_to_ptr.vmem [resolvable:$true] %s19
      %22 = dma.hbm_to_vmem [thread:$0]  %s0, 64, %s20, [#allocation3]
    $region5: #{tpu_custom_call.1} parent=1 // pred_fallthru
      _
    // Predicated region
    $region6: #{tpu_custom_call.1} parent=1 // pred_check
      _
    $region7: #{tpu_custom_call.1} parent=1 // pred_check_branch
      %24 = sbr.rel (0) target = $region9
    $region8: #{tpu_custom_call.1} parent=1 // pred_region
      %s26 = ssub.s32 64, 64
      %27 = vsyncadd [#allocation6], %s26
      %s29 = sshll.u32 [#allocation5], 4
      %s30 = int_to_ptr.vmem [resolvable:$true] %s29
      %32 = dma.hbm_to_vmem [thread:$0]  %s1, 64, %s30, [#allocation6]
    $region9: #{tpu_custom_call.1} parent=1 // pred_fallthru
      _
    // Predicated region
    $region10: #{tpu_custom_call.1} parent=1 // pred_check
      _
    $region11: #{tpu_custom_call.1} parent=1 // pred_check_branch
      %34 = sbr.rel (0) target = $region13
    $region12: #{tpu_custom_call.1} parent=1 // pred_region
      %35 = dma.done [#allocation3], 64
    $region13: #{tpu_custom_call.1} parent=1 // pred_fallthru
      _
    // Predicated region
    $region14: #{tpu_custom_call.1} parent=1 // pred_check
      _
    $region15: #{tpu_custom_call.1} parent=1 // pred_check_branch
      %37 = sbr.rel (0) target = $region17
    $region16: #{tpu_custom_call.1} parent=1 // pred_region
      %38 = dma.done [#allocation6], 64
    $region17: #{tpu_custom_call.1} parent=1 // pred_fallthru
      _
    %v39 = vld [vmem:[#allocation2] sm:$0xf]
    %v40 = vld [vmem:[#allocation5] sm:$0xf]
    %v41 = vsub.f32 %v39, 32.0
    %v42 = vmul.f32 %v41, %v41
    %v43 = vmul.f32 %v42, %v40
    %v44 = vmax.f32 %v43, 0.0
    %v45 = vpow.f32 %v44, 0.1
    %v46 = vmul.f32 %v45, 14.822689
    %vm47 = vcmp.ge.f32.partialorder %v43, 20.0
    %v48 = vsel %vm47, %v46, %v43
    %v50 = vrot.slane %v48, 1
    %v52 = vadd.f32 %v48, %v50
    %v53 = vrot.slane %v48, 2
    %v55 = vadd.f32 %v52, %v53
    %v56 = vrot.slane %v48, 3
    %v58 = vadd.f32 %v55, %v56
    %59 = vst [vmem:[#allocation7] sm:$0x1] %v58
    %v61 = vrot.slane %v40, 1
    %v63 = vadd.f32 %v40, %v61
    %v64 = vrot.slane %v40, 2
    %v66 = vadd.f32 %v63, %v64
    %v67 = vrot.slane %v40, 3
    %v69 = vadd.f32 %v66, %v67
    %70 = vst [vmem:[#allocation8] sm:$0x1] %v69
    // Predicated region
    $region18: #{tpu_custom_call.1} parent=1 // pred_check
      _
    $region19: #{tpu_custom_call.1} parent=1 // pred_check_branch
      %72 = sbr.rel (0) target = $region21
    $region20: #{tpu_custom_call.1} parent=1 // pred_region
      %s74 = ssub.s32 16, 16
      %75 = vsyncadd [#allocation4], %s74
      %s77 = sshll.u32 [#allocation7], 4
      %s78 = int_to_ptr.vmem [resolvable:$true] %s77
      %80 = dma.vmem_to_hbm [thread:$0]  %s78, 16, %s2, [#allocation4]
    $region21: #{tpu_custom_call.1} parent=1 // pred_fallthru
      _
    // Predicated region
    $region22: #{tpu_custom_call.1} parent=1 // pred_check
      _
    $region23: #{tpu_custom_call.1} parent=1 // pred_check_branch
      %82 = sbr.rel (0) target = $region25
    $region24: #{tpu_custom_call.1} parent=1 // pred_region
      %s84 = ssub.s32 16, 16
      %85 = vsyncadd [#allocation9], %s84
      %s87 = sshll.u32 [#allocation8], 4
      %s88 = int_to_ptr.vmem [resolvable:$true] %s87
      %90 = dma.vmem_to_hbm [thread:$0]  %s88, 16, %s3, [#allocation9]
    $region25: #{tpu_custom_call.1} parent=1 // pred_fallthru
      _
    // Predicated region
    $region26: #{tpu_custom_call.1} parent=1 // pred_check
      _
    $region27: #{tpu_custom_call.1} parent=1 // pred_check_branch
      %92 = sbr.rel (0) target = $region29
    $region28: #{tpu_custom_call.1} parent=1 // pred_region
      %93 = dma.done [#allocation4], 16
    $region29: #{tpu_custom_call.1} parent=1 // pred_fallthru
      _
    // Predicated region
    $region30: #{tpu_custom_call.1} parent=1 // pred_check
      _
    $region31: #{tpu_custom_call.1} parent=1 // pred_check_branch
      %95 = sbr.rel (0) target = $region33
    $region32: #{tpu_custom_call.1} parent=1 // pred_region
      %96 = dma.done [#allocation9], 16
    $region33: #{tpu_custom_call.1} parent=1 // pred_fallthru
      _
    %97 = vsyncpa [#allocation3], 1
    %98 = vsyncpa [#allocation6], 1
    %99 = vsyncpa [#allocation4], 1
    %100 = vsyncpa [#allocation9], 1

</llo_original>
